<compile_context>
chip_gen: v7x
topology: tpu7x:2x2x1
jax: 0.10.0
libtpu: 0.0.40
codegen_flags: <defaults>
</compile_context>

<pallas_src>
import jax
import jax.numpy as jnp
from jax.experimental import pallas as pl
from jax.experimental.pallas import tpu as pltpu


def _round_up(n, m):
    return ((n + m - 1) // m) * m


def _fused_actor_critic_kernel(xT_ref, wcol_ref, wslab_ref, out_ref):
    # xT_ref   : [2, TILE_B]    transposed state tile (batch on the lane axis)
    # wcol_ref : [HP, 8]        col 0/1 = W1^T columns, col 2 = b1, col 3 = b2,
    #                           col 4 rows 0..7 = b3 (row 0 actor, row 1 critic)
    # wslab_ref: [HP + 8, HP]   rows 0..HP-1 = W2^T (block-diag), rows HP..HP+7 = W3^T
    # out_ref  : [8, TILE_B]    row 0 = policy mean, row 1 = value
    hp = wslab_ref.shape[1]

    x0 = xT_ref[0:1, :]                       # [1, TILE_B]
    x1 = xT_ref[1:2, :]                       # [1, TILE_B]

    w1c0 = wcol_ref[:, 0:1]                   # [HP, 1]
    w1c1 = wcol_ref[:, 1:2]                   # [HP, 1]
    b1c = wcol_ref[:, 2:3]                    # [HP, 1]
    b2c = wcol_ref[:, 3:4]                    # [HP, 1]
    b3c = wcol_ref[0:8, 4:5]                  # [8, 1]

    # Layer 1 (K=2) on the VPU: two broadcast multiply-adds (outer products),
    # frees the MXU for layers 2/3 and avoids a wasteful K=2 weight push/pop.
    h = jnp.tanh(w1c0 * x0 + w1c1 * x1 + b1c)                          # [HP, TILE_B]

    # Layer 2 on the MXU: batch streams along the lane / N axis.
    w2t = wslab_ref[0:hp, :]                                           # [HP, HP]
    h = jnp.tanh(jnp.dot(w2t, h, preferred_element_type=jnp.float32) + b2c)

    # Layer 3: only 8 output rows (rows 0/1 live -> mean / value).
    w3t = wslab_ref[hp:hp + 8, :]                                      # [8, HP]
    out = jnp.dot(w3t, h, preferred_element_type=jnp.float32) + b3c    # [8, TILE_B]
    out_ref[...] = out.astype(out_ref.dtype)


def pack_params(params):
    """Fuse actor + critic into one block-diagonal 3-layer MLP and pack the
    weights TRANSPOSED (hidden-on-sublanes, so the kernel computes h^T)."""
    (log_std,
     aw1, ab1, aw2, ab2, aw3, ab3,
     cw1, cb1, cw2, cb2, cw3, cb3) = params

    H = aw1.shape[1]
    H2 = 2 * H
    HP = max(128, _round_up(H2, 128))   # fused hidden width (actor | critic), lane-dense

    # Column slab: W1^T columns and all biases as columns (clean broadcasts).
    wcol = jnp.zeros((HP, 8), jnp.float32)
    wcol = wcol.at[:H, 0].set(aw1[0]).at[H:H2, 0].set(cw1[0])      # W1^T[:, 0]
    wcol = wcol.at[:H, 1].set(aw1[1]).at[H:H2, 1].set(cw1[1])      # W1^T[:, 1]
    wcol = wcol.at[:H, 2].set(ab1[0]).at[H:H2, 2].set(cb1[0])      # b1
    wcol = wcol.at[:H, 3].set(ab2[0]).at[H:H2, 3].set(cb2[0])      # b2
    wcol = wcol.at[0, 4].set(ab3[0, 0]).at[1, 4].set(cb3[0, 0])    # b3 (rows 0/1)

    # Row slab: W2^T block-diagonal [HP, HP] stacked on W3^T [8, HP].
    w2t = jnp.zeros((HP, HP), jnp.float32)
    w2t = w2t.at[:H, :H].set(aw2.T).at[H:H2, H:H2].set(cw2.T)
    w3t = jnp.zeros((8, HP), jnp.float32)
    w3t = w3t.at[0, :H].set(aw3[:, 0]).at[1, H:H2].set(cw3[:, 0])
    wslab = jnp.concatenate([w2t, w3t], axis=0)                    # [HP + 8, HP]

    return wcol, wslab, log_std


@jax.jit
def actor_critic_forward(state, wcol, wslab, log_std):
    """Returns (policy_mean [B,1], policy_std [1,1], value [B])."""
    B, F = state.shape

    # Batch tiling (lane axis => multiples of 128).  Ensure >=2 grid steps for
    # B >= 256 (v7x megacore), cap TILE_B at 4096 (VMEM-safe on v5e/v6e/v7x),
    # and keep last-tile padding waste small.
    B128 = _round_up(B, 128)
    cap = 4096
    steps = 1 if B128 < 256 else max(2, pl.cdiv(B128, cap))
    TILE_B = _round_up(pl.cdiv(B128, steps), 128)
    B_pad = steps * TILE_B

    # Transpose so batch is the lane axis; only the batch axis is padded.
    xT = jnp.zeros((F, B_pad), jnp.float32).at[:, :B].set(state.astype(jnp.float32).T)

    out = pl.pallas_call(
        _fused_actor_critic_kernel,
        out_shape=jax.ShapeDtypeStruct((8, B_pad), jnp.float32),
        grid_spec=pltpu.PrefetchScalarGridSpec(
            num_scalar_prefetch=0,
            grid=(steps,),
            in_specs=[
                pl.BlockSpec((F, TILE_B), lambda i: (0, i)),       # state tile (pipelined)
                pl.BlockSpec(wcol.shape, lambda i: (0, 0)),        # column slab, resident
                pl.BlockSpec(wslab.shape, lambda i: (0, 0)),       # weight slab, resident
            ],
            out_specs=pl.BlockSpec((8, TILE_B), lambda i: (0, i)), # lane-dense [8, TILE_B]
        ),
        compiler_params=pltpu.CompilerParams(
            dimension_semantics=("parallel",),   # shards batch tiles across TCs on v7x
        ),
    )(xT, wcol, wslab)

    mean = out[0, :B].reshape(B, 1)   # actor head (contiguous row read)
    value = out[1, :B]                # critic head (already squeezed)
    std = jnp.exp(log_std)            # state-independent: computed outside the kernel
    return mean, std, value


def init_params(key, hidden_size):
    """Deterministic synthetic parameters matching nn.Linear shapes.

    Weights stored as [in, out] (transposed relative to torch's [out, in])."""
    def linear(k, fan_in, fan_out):
        kw, kb = jax.random.split(k)
        bound = 1.0 / jnp.sqrt(fan_in)
        w = jax.random.uniform(kw, (fan_in, fan_out), jnp.float32, -bound, bound)
        b = jax.random.uniform(kb, (1, fan_out), jnp.float32, -bound, bound)
        return w, b

    keys = jax.random.split(key, 6)
    aw1, ab1 = linear(keys[0], 2, hidden_size)
    aw2, ab2 = linear(keys[1], hidden_size, hidden_size)
    aw3, ab3 = linear(keys[2], hidden_size, 1)
    cw1, cb1 = linear(keys[3], 2, hidden_size)
    cw2, cb2 = linear(keys[4], hidden_size, hidden_size)
    cw3, cb3 = linear(keys[5], hidden_size, 1)
    log_std = jnp.zeros((1, 1), jnp.float32)   # policy_log_std = Parameter([[0.0]])
    return (log_std,
            aw1, ab1, aw2, ab2, aw3, ab3,
            cw1, cb1, cw2, cb2, cw3, cb3)


def _reference(state, params):
    (log_std,
     aw1, ab1, aw2, ab2, aw3, ab3,
     cw1, cb1, cw2, cb2, cw3, cb3) = params

    def mlp(x, w1, b1, w2, b2, w3, b3):
        h = jnp.tanh(x @ w1 + b1)
        h = jnp.tanh(h @ w2 + b2)
        return h @ w3 + b3

    mean = mlp(state, aw1, ab1, aw2, ab2, aw3, ab3)
    std = jnp.exp(log_std)
    value = mlp(state, cw1, cb1, cw2, cb2, cw3, cb3)[:, 0]
    return mean, std, value


if __name__ == "__main__":
    key = jax.random.PRNGKey(0)
    k_param, k_state, k_state2 = jax.random.split(key, 3)

    hidden_size = 32
    batch = 8
    params = init_params(k_param, hidden_size)
    state = jax.random.normal(k_state, (batch, 2), jnp.float32)    # [B, 2]

    wcol, wslab, log_std = pack_params(params)                     # packed once
    mean, std, value = actor_critic_forward(state, wcol, wslab, log_std)
    jax.block_until_ready((mean, std, value))

    # Correctness check against a pure-JAX reference of the unfused math.
    ref_mean, ref_std, ref_value = _reference(state, params)
    assert mean.shape == (batch, 1)
    assert std.shape == (1, 1)
    assert value.shape == (batch,)
    assert jnp.allclose(mean, ref_mean, atol=1e-4)
    assert jnp.allclose(std, ref_std, atol=1e-6)
    assert jnp.allclose(value, ref_value, atol=1e-4)

    # Extra check: a batch that exercises a multi-step grid and a ragged last tile.
    batch2 = 300
    state2 = jax.random.normal(k_state2, (batch2, 2), jnp.float32)
    mean2, std2, value2 = actor_critic_forward(state2, wcol, wslab, log_std)
    jax.block_until_ready((mean2, std2, value2))
    ref_mean2, _, ref_value2 = _reference(state2, params)
    assert mean2.shape == (batch2, 1) and value2.shape == (batch2,)
    assert jnp.allclose(mean2, ref_mean2, atol=1e-4)
    assert jnp.allclose(value2, ref_value2, atol=1e-4)

    # TODO(synk): torch.distributions.Normal is returned as (mean, std) tensors;
    # the distribution object itself has no Pallas equivalent.
    print("KERNEL_OK")
</pallas_src>

<mosaic_0001>
module attributes {stable_mosaic.version = 11 : i64} {
  func.func @_fused_actor_critic_kernel(%arg0: i32, %arg1: memref<2x128xf32, #tpu.memory_space<vmem>>, %arg2: memref<128x8xf32, #tpu.memory_space<vmem>>, %arg3: memref<136x128xf32, #tpu.memory_space<vmem>>, %arg4: memref<8x128xf32, #tpu.memory_space<vmem>>) attributes {dimension_semantics = [#tpu.dimension_semantics<parallel>], iteration_bounds = array<i64: 1>, scalar_prefetch = 0 : i64, scratch_operands = 0 : i64, tpu.core_type = #tpu.core_type<tc>, window_params = [{transform_indices = @transform_0, window_bounds = array<i64: 2, 128>}, {pipeline_mode = #tpu.pipeline_mode<synchronous>, transform_indices = @transform_1, window_bounds = array<i64: 128, 8>}, {pipeline_mode = #tpu.pipeline_mode<synchronous>, transform_indices = @transform_2, window_bounds = array<i64: 136, 128>}, {transform_indices = @transform_3, window_bounds = array<i64: 8, 128>}]} {
    %c0 = arith.constant 0 : index
    %c0_0 = arith.constant 0 : index
    %0 = vector.load %arg1[%c0, %c0_0] : memref<2x128xf32, #tpu.memory_space<vmem>>, vector<1x128xf32>
    %c1 = arith.constant 1 : index
    %c0_1 = arith.constant 0 : index
    %1 = vector.load %arg1[%c1, %c0_1] : memref<2x128xf32, #tpu.memory_space<vmem>>, vector<1x128xf32>
    %c0_2 = arith.constant 0 : index
    %c0_3 = arith.constant 0 : index
    %2 = vector.load %arg2[%c0_2, %c0_3] : memref<128x8xf32, #tpu.memory_space<vmem>>, vector<128x1xf32>
    %c0_4 = arith.constant 0 : index
    %c1_5 = arith.constant 1 : index
    %3 = vector.load %arg2[%c0_4, %c1_5] : memref<128x8xf32, #tpu.memory_space<vmem>>, vector<128x1xf32>
    %c0_6 = arith.constant 0 : index
    %c2 = arith.constant 2 : index
    %4 = vector.load %arg2[%c0_6, %c2] : memref<128x8xf32, #tpu.memory_space<vmem>>, vector<128x1xf32>
    %c0_7 = arith.constant 0 : index
    %c3 = arith.constant 3 : index
    %5 = vector.load %arg2[%c0_7, %c3] : memref<128x8xf32, #tpu.memory_space<vmem>>, vector<128x1xf32>
    %c0_8 = arith.constant 0 : index
    %c4 = arith.constant 4 : index
    %6 = vector.load %arg2[%c0_8, %c4] : memref<128x8xf32, #tpu.memory_space<vmem>>, vector<8x1xf32>
    %7 = vector.broadcast %2 : vector<128x1xf32> to vector<128x128xf32>
    %8 = vector.broadcast %0 : vector<1x128xf32> to vector<128x128xf32>
    %9 = arith.mulf %7, %8 : vector<128x128xf32>
    %10 = vector.broadcast %3 : vector<128x1xf32> to vector<128x128xf32>
    %11 = vector.broadcast %1 : vector<1x128xf32> to vector<128x128xf32>
    %12 = arith.mulf %10, %11 : vector<128x128xf32>
    %13 = arith.addf %9, %12 : vector<128x128xf32>
    %14 = vector.broadcast %4 : vector<128x1xf32> to vector<128x128xf32>
    %15 = arith.addf %13, %14 : vector<128x128xf32>
    %16 = math.tanh %15 : vector<128x128xf32>
    %c0_9 = arith.constant 0 : index
    %c0_10 = arith.constant 0 : index
    %17 = vector.load %arg3[%c0_9, %c0_10] : memref<136x128xf32, #tpu.memory_space<vmem>>, vector<128x128xf32>
    %cst = arith.constant dense<0.000000e+00> : vector<128x128xf32>
    %18 = tpu.matmul %17, %16, %cst {dimension_numbers = #tpu.dot_dimension_numbers<[1], [0], [0], [1], [0, 0, 1, 1], [], []>} : vector<128x128xf32>, vector<128x128xf32>, vector<128x128xf32> -> vector<128x128xf32>
    %19 = vector.broadcast %5 : vector<128x1xf32> to vector<128x128xf32>
    %20 = arith.addf %18, %19 : vector<128x128xf32>
    %21 = math.tanh %20 : vector<128x128xf32>
    %c128 = arith.constant 128 : index
    %c0_11 = arith.constant 0 : index
    %22 = vector.load %arg3[%c128, %c0_11] : memref<136x128xf32, #tpu.memory_space<vmem>>, vector<8x128xf32>
    %cst_12 = arith.constant dense<0.000000e+00> : vector<8x128xf32>
    %23 = tpu.matmul %22, %21, %cst_12 {dimension_numbers = #tpu.dot_dimension_numbers<[1], [0], [0], [1], [0, 0, 1, 1], [], []>} : vector<8x128xf32>, vector<128x128xf32>, vector<8x128xf32> -> vector<8x128xf32>
    %24 = vector.broadcast %6 : vector<8x1xf32> to vector<8x128xf32>
    %25 = arith.addf %23, %24 : vector<8x128xf32>
    %c0_13 = arith.constant 0 : index
    %c0_14 = arith.constant 0 : index
    %26 = vector.load %arg4[%c0_13, %c0_14] : memref<8x128xf32, #tpu.memory_space<vmem>>, vector<8x128xf32>
    tpu.vector_store %arg4[%c0_13, %c0_14], %25 {strides = array<i32>} : memref<8x128xf32, #tpu.memory_space<vmem>>, vector<8x128xf32>,
    return
  }
  func.func @transform_0(%arg0: i32) -> (i32, i32) {
    %c0_i32 = arith.constant 0 : i32
    %c0_i32_0 = arith.constant 0 : i32
    return %c0_i32, %arg0 : i32, i32
  }
  func.func @transform_1(%arg0: i32) -> (i32, i32) {
    %c0_i32 = arith.constant 0 : i32
    %c0_i32_0 = arith.constant 0 : i32
    %c0_i32_1 = arith.constant 0 : i32
    return %c0_i32, %c0_i32_0 : i32, i32
  }
  func.func @transform_2(%arg0: i32) -> (i32, i32) {
    %c0_i32 = arith.constant 0 : i32
    %c0_i32_0 = arith.constant 0 : i32
    %c0_i32_1 = arith.constant 0 : i32
    return %c0_i32, %c0_i32_0 : i32, i32
  }
  func.func @transform_3(%arg0: i32) -> (i32, i32) {
    %c0_i32 = arith.constant 0 : i32
    %c0_i32_0 = arith.constant 0 : i32
    return %c0_i32, %arg0 : i32, i32
  }
}

</mosaic_0001>

<llo_original>
// kernel: actor_critic_forward.1
$region0: #{actor_critic_forward.1}
  #allocation0 [shape = 'u32[]', space=smem, size = 0x4, offset = 0x4, fixed_abs, tag = 'smem constant byte address 0x4 - core index']
  #allocation1 [shape = 'u32[144,128]{1,0:T(1,128)}', space=vmem, size = 0x12000, scoped, tag = 'internal scratch']
  %s0 = inlined_call_operand.vmem [shape: f32[2,128], index: 0, kind: input, shape index: {}]
  %s1 = inlined_call_operand.vmem [shape: f32[128,8], index: 1, kind: input, shape index: {}]
  %s2 = inlined_call_operand.vmem [shape: f32[136,128], index: 2, kind: input, shape index: {}]
  %s3 = inlined_call_operand.vmem [shape: f32[8,128], index: 3, kind: output, shape index: {}]
  %s4 = sld [smem:[#allocation0]]
  $region22: #{actor_critic_forward.1} parent=0
    _
  %s6 = ssub.s32 1, %s4
  %s7 = scalar_select 0, %s6, %s4
  // Predicated region
  $region2: #{actor_critic_forward.1} parent=0 // pred_check
    _
  $region3: #{actor_critic_forward.1} parent=0 // pred_check_branch
    %9 = sbr.rel (0) target = $region5
  $region4: #{actor_critic_forward.1} parent=0 // pred_region
    _
  $region5: #{actor_critic_forward.1} parent=0 // pred_fallthru
    _
  // Predicated region
  $region6: #{actor_critic_forward.1} parent=0 // pred_check
    _
  $region7: #{actor_critic_forward.1} parent=0 // pred_check_branch
    %11 = sbr.rel (0) target = $region9
  $region8: #{actor_critic_forward.1} parent=0 // pred_region
    _
  $region9: #{actor_critic_forward.1} parent=0 // pred_fallthru
    _
  // Predicated region
  $region10: #{actor_critic_forward.1} parent=0 // pred_check
    _
  $region11: #{actor_critic_forward.1} parent=0 // pred_check_branch
    %13 = sbr.rel (0) target = $region13
  $region12: #{actor_critic_forward.1} parent=0 // pred_region
    _
  $region13: #{actor_critic_forward.1} parent=0 // pred_fallthru
    _
  %v14 = vld [vmem:[%s0] sm:$0x1]
  %v15 = vld [vmem:[%s0 + $0x1] sm:$0x1]
  %v16 = vld [vmem:[%s1] sm:$0xff]
  %v17 = vld [vmem:[%s1 + $0x8] sm:$0xff]
  %v18 = vld [vmem:[%s1 + $0x10] sm:$0xff]
  %v19 = vld [vmem:[%s1 + $0x18] sm:$0xff]
  %v20 = vld [vmem:[%s1 + $0x20] sm:$0xff]
  %v21 = vld [vmem:[%s1 + $0x28] sm:$0xff]
  %v22 = vld [vmem:[%s1 + $0x30] sm:$0xff]
  %v23 = vld [vmem:[%s1 + $0x38] sm:$0xff]
  %v24 = vld [vmem:[%s1 + $0x40] sm:$0xff]
  %v25 = vld [vmem:[%s1 + $0x48] sm:$0xff]
  %v26 = vld [vmem:[%s1 + $0x50] sm:$0xff]
  %v27 = vld [vmem:[%s1 + $0x58] sm:$0xff]
  %v28 = vld [vmem:[%s1 + $0x60] sm:$0xff]
  %v29 = vld [vmem:[%s1 + $0x68] sm:$0xff]
  %v30 = vld [vmem:[%s1 + $0x70] sm:$0xff]
  %v31 = vld [vmem:[%s1 + $0x78] sm:$0xff]
  %33 = vset.pattern.permute.xlu0 0
  %34 = vperm.xlu0 %33, %v16
  %v35 = vpop.permute.xlu0 %34
  %38 = vset.pattern.permute.xlu0 0
  %39 = vperm.xlu0 %38, %v17
  %v40 = vpop.permute.xlu0 %39
  %43 = vset.pattern.permute.xlu0 0
  %44 = vperm.xlu0 %43, %v18
  %v45 = vpop.permute.xlu0 %44
  %48 = vset.pattern.permute.xlu0 0
  %49 = vperm.xlu0 %48, %v19
  %v50 = vpop.permute.xlu0 %49
  %53 = vset.pattern.permute.xlu0 0
  %54 = vperm.xlu0 %53, %v20
  %v55 = vpop.permute.xlu0 %54
  %58 = vset.pattern.permute.xlu0 0
  %59 = vperm.xlu0 %58, %v21
  %v60 = vpop.permute.xlu0 %59
  %63 = vset.pattern.permute.xlu0 0
  %64 = vperm.xlu0 %63, %v22
  %v65 = vpop.permute.xlu0 %64
  %68 = vset.pattern.permute.xlu0 0
  %69 = vperm.xlu0 %68, %v23
  %v70 = vpop.permute.xlu0 %69
  %73 = vset.pattern.permute.xlu0 0
  %74 = vperm.xlu0 %73, %v24
  %v75 = vpop.permute.xlu0 %74
  %78 = vset.pattern.permute.xlu0 0
  %79 = vperm.xlu0 %78, %v25
  %v80 = vpop.permute.xlu0 %79
  %83 = vset.pattern.permute.xlu0 0
  %84 = vperm.xlu0 %83, %v26
  %v85 = vpop.permute.xlu0 %84
  %88 = vset.pattern.permute.xlu0 0
  %89 = vperm.xlu0 %88, %v27
  %v90 = vpop.permute.xlu0 %89
  %93 = vset.pattern.permute.xlu0 0
  %94 = vperm.xlu0 %93, %v28
  %v95 = vpop.permute.xlu0 %94
  %98 = vset.pattern.permute.xlu0 0
  %99 = vperm.xlu0 %98, %v29
  %v100 = vpop.permute.xlu0 %99
  %103 = vset.pattern.permute.xlu0 0
  %104 = vperm.xlu0 %103, %v30
  %v105 = vpop.permute.xlu0 %104
  %108 = vset.pattern.permute.xlu0 0
  %109 = vperm.xlu0 %108, %v31
  %v110 = vpop.permute.xlu0 %109
  %v112 = vlaneseq
  %v113 = vshrl.u32 %v112, 7
  %v114 = vsub.s32 0, %v113
  %v115 = vrot.slane %v14, %v114
  %v116 = vmul.f32 %v35, %v115
  %v117 = vmul.f32 %v40, %v115
  %v118 = vmul.f32 %v45, %v115
  %v119 = vmul.f32 %v50, %v115
  %v120 = vmul.f32 %v55, %v115
  %v121 = vmul.f32 %v60, %v115
  %v122 = vmul.f32 %v65, %v115
  %v123 = vmul.f32 %v70, %v115
  %v124 = vmul.f32 %v75, %v115
  %v125 = vmul.f32 %v80, %v115
  %v126 = vmul.f32 %v85, %v115
  %v127 = vmul.f32 %v90, %v115
  %v128 = vmul.f32 %v95, %v115
  %v129 = vmul.f32 %v100, %v115
  %v130 = vmul.f32 %v105, %v115
  %v131 = vmul.f32 %v110, %v115
  %132 = vset.pattern.permute.xlu0 1
  %133 = vperm.xlu0 %132, %v16
  %v134 = vpop.permute.xlu0 %133
  %136 = vset.pattern.permute.xlu0 1
  %137 = vperm.xlu0 %136, %v17
  %v138 = vpop.permute.xlu0 %137
  %140 = vset.pattern.permute.xlu0 1
  %141 = vperm.xlu0 %140, %v18
  %v142 = vpop.permute.xlu0 %141
  %144 = vset.pattern.permute.xlu0 1
  %145 = vperm.xlu0 %144, %v19
  %v146 = vpop.permute.xlu0 %145
  %148 = vset.pattern.permute.xlu0 1
  %149 = vperm.xlu0 %148, %v20
  %v150 = vpop.permute.xlu0 %149
  %152 = vset.pattern.permute.xlu0 1
  %153 = vperm.xlu0 %152, %v21
  %v154 = vpop.permute.xlu0 %153
  %156 = vset.pattern.permute.xlu0 1
  %157 = vperm.xlu0 %156, %v22
  %v158 = vpop.permute.xlu0 %157
  %160 = vset.pattern.permute.xlu0 1
  %161 = vperm.xlu0 %160, %v23
  %v162 = vpop.permute.xlu0 %161
  %164 = vset.pattern.permute.xlu0 1
  %165 = vperm.xlu0 %164, %v24
  %v166 = vpop.permute.xlu0 %165
  %168 = vset.pattern.permute.xlu0 1
  %169 = vperm.xlu0 %168, %v25
  %v170 = vpop.permute.xlu0 %169
  %172 = vset.pattern.permute.xlu0 1
  %173 = vperm.xlu0 %172, %v26
  %v174 = vpop.permute.xlu0 %173
  %176 = vset.pattern.permute.xlu0 1
  %177 = vperm.xlu0 %176, %v27
  %v178 = vpop.permute.xlu0 %177
  %180 = vset.pattern.permute.xlu0 1
  %181 = vperm.xlu0 %180, %v28
  %v182 = vpop.permute.xlu0 %181
  %184 = vset.pattern.permute.xlu0 1
  %185 = vperm.xlu0 %184, %v29
  %v186 = vpop.permute.xlu0 %185
  %188 = vset.pattern.permute.xlu0 1
  %189 = vperm.xlu0 %188, %v30
  %v190 = vpop.permute.xlu0 %189
  %192 = vset.pattern.permute.xlu0 1
  %193 = vperm.xlu0 %192, %v31
  %v194 = vpop.permute.xlu0 %193
  %v196 = vlaneseq
  %v197 = vshrl.u32 %v196, 7
  %v198 = vsub.s32 0, %v197
  %v199 = vrot.slane %v15, %v198
  %v200 = vmul.f32 %v134, %v199
  %v201 = vmul.f32 %v138, %v199
  %v202 = vmul.f32 %v142, %v199
  %v203 = vmul.f32 %v146, %v199
  %v204 = vmul.f32 %v150, %v199
  %v205 = vmul.f32 %v154, %v199
  %v206 = vmul.f32 %v158, %v199
  %v207 = vmul.f32 %v162, %v199
  %v208 = vmul.f32 %v166, %v199
  %v209 = vmul.f32 %v170, %v199
  %v210 = vmul.f32 %v174, %v199
  %v211 = vmul.f32 %v178, %v199
  %v212 = vmul.f32 %v182, %v199
  %v213 = vmul.f32 %v186, %v199
  %v214 = vmul.f32 %v190, %v199
  %v215 = vmul.f32 %v194, %v199
  %v216 = vadd.f32 %v116, %v200
  %v217 = vadd.f32 %v117, %v201
  %v218 = vadd.f32 %v118, %v202
  %v219 = vadd.f32 %v119, %v203
  %v220 = vadd.f32 %v120, %v204
  %v221 = vadd.f32 %v121, %v205
  %v222 = vadd.f32 %v122, %v206
  %v223 = vadd.f32 %v123, %v207
  %v224 = vadd.f32 %v124, %v208
  %v225 = vadd.f32 %v125, %v209
  %v226 = vadd.f32 %v126, %v210
  %v227 = vadd.f32 %v127, %v211
  %v228 = vadd.f32 %v128, %v212
  %v229 = vadd.f32 %v129, %v213
  %v230 = vadd.f32 %v130, %v214
  %v231 = vadd.f32 %v131, %v215
  %232 = vset.pattern.permute.xlu0 2
  %233 = vperm.xlu0 %232, %v16
  %v234 = vpop.permute.xlu0 %233
  %236 = vset.pattern.permute.xlu0 2
  %237 = vperm.xlu0 %236, %v17
  %v238 = vpop.permute.xlu0 %237
  %240 = vset.pattern.permute.xlu0 2
  %241 = vperm.xlu0 %240, %v18
  %v242 = vpop.permute.xlu0 %241
  %244 = vset.pattern.permute.xlu0 2
  %245 = vperm.xlu0 %244, %v19
  %v246 = vpop.permute.xlu0 %245
  %248 = vset.pattern.permute.xlu0 2
  %249 = vperm.xlu0 %248, %v20
  %v250 = vpop.permute.xlu0 %249
  %252 = vset.pattern.permute.xlu0 2
  %253 = vperm.xlu0 %252, %v21
  %v254 = vpop.permute.xlu0 %253
  %256 = vset.pattern.permute.xlu0 2
  %257 = vperm.xlu0 %256, %v22
  %v258 = vpop.permute.xlu0 %257
  %260 = vset.pattern.permute.xlu0 2
  %261 = vperm.xlu0 %260, %v23
  %v262 = vpop.permute.xlu0 %261
  %264 = vset.pattern.permute.xlu0 2
  %265 = vperm.xlu0 %264, %v24
  %v266 = vpop.permute.xlu0 %265
  %268 = vset.pattern.permute.xlu0 2
  %269 = vperm.xlu0 %268, %v25
  %v270 = vpop.permute.xlu0 %269
  %272 = vset.pattern.permute.xlu0 2
  %273 = vperm.xlu0 %272, %v26
  %v274 = vpop.permute.xlu0 %273
  %276 = vset.pattern.permute.xlu0 2
  %277 = vperm.xlu0 %276, %v27
  %v278 = vpop.permute.xlu0 %277
  %280 = vset.pattern.permute.xlu0 2
  %281 = vperm.xlu0 %280, %v28
  %v282 = vpop.permute.xlu0 %281
  %284 = vset.pattern.permute.xlu0 2
  %285 = vperm.xlu0 %284, %v29
  %v286 = vpop.permute.xlu0 %285
  %288 = vset.pattern.permute.xlu0 2
  %289 = vperm.xlu0 %288, %v30
  %v290 = vpop.permute.xlu0 %289
  %292 = vset.pattern.permute.xlu0 2
  %293 = vperm.xlu0 %292, %v31
  %v294 = vpop.permute.xlu0 %293
  %v296 = vadd.f32 %v216, %v234
  %v297 = vadd.f32 %v217, %v238
  %v298 = vadd.f32 %v218, %v242
  %v299 = vadd.f32 %v219, %v246
  %v300 = vadd.f32 %v220, %v250
  %v301 = vadd.f32 %v221, %v254
  %v302 = vadd.f32 %v222, %v258
  %v303 = vadd.f32 %v223, %v262
  %v304 = vadd.f32 %v224, %v266
  %v305 = vadd.f32 %v225, %v270
  %v306 = vadd.f32 %v226, %v274
  %v307 = vadd.f32 %v227, %v278
  %v308 = vadd.f32 %v228, %v282
  %v309 = vadd.f32 %v229, %v286
  %v310 = vadd.f32 %v230, %v290
  %v311 = vadd.f32 %v231, %v294
  %v312 = vtanh.pop %v296
  %v313 = vtanh.pop %v297
  %v314 = vtanh.pop %v298
  %v315 = vtanh.pop %v299
  %v316 = vtanh.pop %v300
  %v317 = vtanh.pop %v301
  %v318 = vtanh.pop %v302
  %v319 = vtanh.pop %v303
  %v320 = vtanh.pop %v304
  %v321 = vtanh.pop %v305
  %v322 = vtanh.pop %v306
  %v323 = vtanh.pop %v307
  %v324 = vtanh.pop %v308
  %v325 = vtanh.pop %v309
  %v326 = vtanh.pop %v310
  %v327 = vtanh.pop %v311
  %v328 = vld [vmem:[%s2] sm:$0xff]
  %v329 = vld [vmem:[%s2 + $0x8] sm:$0xff]
  %v330 = vld [vmem:[%s2 + $0x10] sm:$0xff]
  %v331 = vld [vmem:[%s2 + $0x18] sm:$0xff]
  %v332 = vld [vmem:[%s2 + $0x20] sm:$0xff]
  %v333 = vld [vmem:[%s2 + $0x28] sm:$0xff]
  %v334 = vld [vmem:[%s2 + $0x30] sm:$0xff]
  %v335 = vld [vmem:[%s2 + $0x38] sm:$0xff]
  %v336 = vld [vmem:[%s2 + $0x40] sm:$0xff]
  %v337 = vld [vmem:[%s2 + $0x48] sm:$0xff]
  %v338 = vld [vmem:[%s2 + $0x50] sm:$0xff]
  %v339 = vld [vmem:[%s2 + $0x58] sm:$0xff]
  %v340 = vld [vmem:[%s2 + $0x60] sm:$0xff]
  %v341 = vld [vmem:[%s2 + $0x68] sm:$0xff]
  %v342 = vld [vmem:[%s2 + $0x70] sm:$0xff]
  %v343 = vld [vmem:[%s2 + $0x78] sm:$0xff]
  %344 = vset.pattern.permute.xlu0 3
  %345 = vperm.xlu0 %344, %v16
  %v346 = vpop.permute.xlu0 %345
  %348 = vset.pattern.permute.xlu0 3
  %349 = vperm.xlu0 %348, %v17
  %v350 = vpop.permute.xlu0 %349
  %352 = vset.pattern.permute.xlu0 3
  %353 = vperm.xlu0 %352, %v18
  %v354 = vpop.permute.xlu0 %353
  %356 = vset.pattern.permute.xlu0 3
  %357 = vperm.xlu0 %356, %v19
  %v358 = vpop.permute.xlu0 %357
  %360 = vset.pattern.permute.xlu0 3
  %361 = vperm.xlu0 %360, %v20
  %v362 = vpop.permute.xlu0 %361
  %364 = vset.pattern.permute.xlu0 3
  %365 = vperm.xlu0 %364, %v21
  %v366 = vpop.permute.xlu0 %365
  %368 = vset.pattern.permute.xlu0 3
  %369 = vperm.xlu0 %368, %v22
  %v370 = vpop.permute.xlu0 %369
  %372 = vset.pattern.permute.xlu0 3
  %373 = vperm.xlu0 %372, %v23
  %v374 = vpop.permute.xlu0 %373
  %376 = vset.pattern.permute.xlu0 3
  %377 = vperm.xlu0 %376, %v24
  %v378 = vpop.permute.xlu0 %377
  %380 = vset.pattern.permute.xlu0 3
  %381 = vperm.xlu0 %380, %v25
  %v382 = vpop.permute.xlu0 %381
  %384 = vset.pattern.permute.xlu0 3
  %385 = vperm.xlu0 %384, %v26
  %v386 = vpop.permute.xlu0 %385
  %388 = vset.pattern.permute.xlu0 3
  %389 = vperm.xlu0 %388, %v27
  %v390 = vpop.permute.xlu0 %389
  %392 = vset.pattern.permute.xlu0 3
  %393 = vperm.xlu0 %392, %v28
  %v394 = vpop.permute.xlu0 %393
  %396 = vset.pattern.permute.xlu0 3
  %397 = vperm.xlu0 %396, %v29
  %v398 = vpop.permute.xlu0 %397
  %400 = vset.pattern.permute.xlu0 3
  %401 = vperm.xlu0 %400, %v30
  %v402 = vpop.permute.xlu0 %401
  %404 = vset.pattern.permute.xlu0 3
  %405 = vperm.xlu0 %404, %v31
  %v406 = vpop.permute.xlu0 %405
  %408 = vmatprep.subr.mxu0 0.0
  %409 = vmatpush1.msra.mxu0 %v312
  %410 = vmatprep.subr.mxu0 0.0
  %411 = vmatpush1.msra.mxu0 %v313
  %412 = vmatprep.subr.mxu0 0.0
  %413 = vmatpush1.msra.mxu0 %v314
  %414 = vmatprep.subr.mxu0 0.0
  %415 = vmatpush1.msra.mxu0 %v315
  %416 = vmatprep.subr.mxu0 0.0
  %417 = vmatpush1.msra.mxu0 %v316
  %418 = vmatprep.subr.mxu0 0.0
  %419 = vmatpush1.msra.mxu0 %v317
  %420 = vmatprep.subr.mxu0 0.0
  %421 = vmatpush1.msra.mxu0 %v318
  %422 = vmatprep.subr.mxu0 0.0
  %423 = vmatpush1.msra.mxu0 %v319
  %424 = vmatprep.subr.mxu0 0.0
  %425 = vmatpush1.msra.mxu0 %v320
  %426 = vmatprep.subr.mxu0 0.0
  %427 = vmatpush1.msra.mxu0 %v321
  %428 = vmatprep.subr.mxu0 0.0
  %429 = vmatpush1.msra.mxu0 %v322
  %430 = vmatprep.subr.mxu0 0.0
  %431 = vmatpush1.msra.mxu0 %v323
  %432 = vmatprep.subr.mxu0 0.0
  %433 = vmatpush1.msra.mxu0 %v324
  %434 = vmatprep.subr.mxu0 0.0
  %435 = vmatpush1.msra.mxu0 %v325
  %436 = vmatprep.subr.mxu0 0.0
  %437 = vmatpush1.msra.mxu0 %v326
  %438 = vmatprep.subr.mxu0 0.0
  %439 = vmatpush1.msra.mxu0 %v327
  %440 = vmatprep.subr.mxu0 0.0
  %441 = vmatpush1.msra.mxu0 0.0
  %442 = vmatprep.subr.mxu0 0.0
  %443 = vmatpush1.msra.mxu0 0.0
  %444 = vmatprep.subr.mxu0 0.0
  %445 = vmatpush1.msra.mxu0 0.0
  %446 = vmatprep.subr.mxu0 0.0
  %447 = vmatpush1.msra.mxu0 0.0
  %448 = vmatprep.subr.mxu0 0.0
  %449 = vmatpush1.msra.mxu0 0.0
  %450 = vmatprep.subr.mxu0 0.0
  %451 = vmatpush1.msra.mxu0 0.0
  %452 = vmatprep.subr.mxu0 0.0
  %453 = vmatpush1.msra.mxu0 0.0
  %454 = vmatprep.subr.mxu0 0.0
  %455 = vmatpush1.msra.mxu0 0.0
  %456 = vmatprep.subr.mxu0 0.0
  %457 = vmatpush1.msra.mxu0 0.0
  %458 = vmatprep.subr.mxu0 0.0
  %459 = vmatpush1.msra.mxu0 0.0
  %460 = vmatprep.subr.mxu0 0.0
  %461 = vmatpush1.msra.mxu0 0.0
  %462 = vmatprep.subr.mxu0 0.0
  %463 = vmatpush1.msra.mxu0 0.0
  %464 = vmatprep.subr.mxu0 0.0
  %465 = vmatpush1.msra.mxu0 0.0
  %466 = vmatprep.subr.mxu0 0.0
  %467 = vmatpush1.msra.mxu0 0.0
  %468 = vmatprep.subr.mxu0 0.0
  %469 = vmatpush1.msra.mxu0 0.0
  %470 = vmatprep.subr.mxu0 0.0
  %471 = vmatpush1.msra.mxu0 0.0
  %472 = vmatprep.mubr.f32.mxu0 0.0
  %473 = vmatmul.mubr.f32.gmra.mrb[0].mxu0 %v328
  %v474 = vpop.f32.mrb[0].mxu0
  %v475 = vadd.f32 %v346, %v474
  %v476 = vpop.f32.mrb[0].mxu0
  %477 = vmatprep.mubr.f32.mxu0 0.0
  %478 = vmatmul.mubr.f32.gmra.mrb[0].mxu0 %v329
  %v479 = vpop.f32.mrb[0].mxu0
  %v480 = vadd.f32 %v350, %v479
  %v481 = vpop.f32.mrb[0].mxu0
  %482 = vmatprep.mubr.f32.mxu0 0.0
  %483 = vmatmul.mubr.f32.gmra.mrb[0].mxu0 %v330
  %v484 = vpop.f32.mrb[0].mxu0
  %v485 = vadd.f32 %v354, %v484
  %v486 = vpop.f32.mrb[0].mxu0
  %487 = vmatprep.mubr.f32.mxu0 0.0
  %488 = vmatmul.mubr.f32.gmra.mrb[0].mxu0 %v331
  %v489 = vpop.f32.mrb[0].mxu0
  %v490 = vadd.f32 %v358, %v489
  %v491 = vpop.f32.mrb[0].mxu0
  %492 = vmatprep.mubr.f32.mxu0 0.0
  %493 = vmatmul.mubr.f32.gmra.mrb[0].mxu0 %v332
  %v494 = vpop.f32.mrb[0].mxu0
  %v495 = vadd.f32 %v362, %v494
  %v496 = vpop.f32.mrb[0].mxu0
  %497 = vmatprep.mubr.f32.mxu0 0.0
  %498 = vmatmul.mubr.f32.gmra.mrb[0].mxu0 %v333
  %v499 = vpop.f32.mrb[0].mxu0
  %v500 = vadd.f32 %v366, %v499
  %v501 = vpop.f32.mrb[0].mxu0
  %502 = vmatprep.mubr.f32.mxu0 0.0
  %503 = vmatmul.mubr.f32.gmra.mrb[0].mxu0 %v334
  %v504 = vpop.f32.mrb[0].mxu0
  %v505 = vadd.f32 %v370, %v504
  %v506 = vpop.f32.mrb[0].mxu0
  %507 = vmatprep.mubr.f32.mxu0 0.0
  %508 = vmatmul.mubr.f32.gmra.mrb[0].mxu0 %v335
  %v509 = vpop.f32.mrb[0].mxu0
  %v510 = vadd.f32 %v374, %v509
  %v511 = vpop.f32.mrb[0].mxu0
  %512 = vmatprep.mubr.f32.mxu0 0.0
  %513 = vmatmul.mubr.f32.gmra.mrb[0].mxu0 %v336
  %v514 = vpop.f32.mrb[0].mxu0
  %v515 = vadd.f32 %v378, %v514
  %v516 = vpop.f32.mrb[0].mxu0
  %517 = vmatprep.mubr.f32.mxu0 0.0
  %518 = vmatmul.mubr.f32.gmra.mrb[0].mxu0 %v337
  %v519 = vpop.f32.mrb[0].mxu0
  %v520 = vadd.f32 %v382, %v519
  %v521 = vpop.f32.mrb[0].mxu0
  %522 = vmatprep.mubr.f32.mxu0 0.0
  %523 = vmatmul.mubr.f32.gmra.mrb[0].mxu0 %v338
  %v524 = vpop.f32.mrb[0].mxu0
  %v525 = vadd.f32 %v386, %v524
  %v526 = vpop.f32.mrb[0].mxu0
  %527 = vmatprep.mubr.f32.mxu0 0.0
  %528 = vmatmul.mubr.f32.gmra.mrb[0].mxu0 %v339
  %v529 = vpop.f32.mrb[0].mxu0
  %v530 = vadd.f32 %v390, %v529
  %v531 = vpop.f32.mrb[0].mxu0
  %532 = vmatprep.mubr.f32.mxu0 0.0
  %533 = vmatmul.mubr.f32.gmra.mrb[0].mxu0 %v340
  %v534 = vpop.f32.mrb[0].mxu0
  %v535 = vadd.f32 %v394, %v534
  %v536 = vpop.f32.mrb[0].mxu0
  %537 = vmatprep.mubr.f32.mxu0 0.0
  %538 = vmatmul.mubr.f32.gmra.mrb[0].mxu0 %v341
  %v539 = vpop.f32.mrb[0].mxu0
  %v540 = vadd.f32 %v398, %v539
  %v541 = vpop.f32.mrb[0].mxu0
  %542 = vmatprep.mubr.f32.mxu0 0.0
  %543 = vmatmul.mubr.f32.gmra.mrb[0].mxu0 %v342
  %v544 = vpop.f32.mrb[0].mxu0
  %v545 = vadd.f32 %v402, %v544
  %v546 = vpop.f32.mrb[0].mxu0
  %547 = vmatprep.mubr.f32.mxu0 0.0
  %548 = vmatmul.mubr.f32.gmra.mrb[0].mxu0 %v343
  %v549 = vpop.f32.mrb[0].mxu0
  %v550 = vadd.f32 %v406, %v549
  %v551 = vpop.f32.mrb[0].mxu0
  %552 = vdwg.mxu0
  %v553 = vtanh.pop %v475
  %v554 = vtanh.pop %v480
  %v555 = vtanh.pop %v485
  %v556 = vtanh.pop %v490
  %v557 = vtanh.pop %v495
  %v558 = vtanh.pop %v500
  %v559 = vtanh.pop %v505
  %v560 = vtanh.pop %v510
  %v561 = vtanh.pop %v515
  %v562 = vtanh.pop %v520
  %v563 = vtanh.pop %v525
  %v564 = vtanh.pop %v530
  %v565 = vtanh.pop %v535
  %v566 = vtanh.pop %v540
  %v567 = vtanh.pop %v545
  %v568 = vtanh.pop %v550
  %v569 = vld [vmem:[%s2 + $0x80] sm:$0xff]
  %570 = vset.pattern.permute.xlu0 4
  %571 = vperm.xlu0 %570, %v16
  %v572 = vpop.permute.xlu0 %571
  %574 = vmatprep.subr.mxu0 0.0
  %575 = vmatpush1.msra.mxu0 %v553
  %576 = vmatprep.subr.mxu0 0.0
  %577 = vmatpush1.msra.mxu0 %v554
  %578 = vmatprep.subr.mxu0 0.0
  %579 = vmatpush1.msra.mxu0 %v555
  %580 = vmatprep.subr.mxu0 0.0
  %581 = vmatpush1.msra.mxu0 %v556
  %582 = vmatprep.subr.mxu0 0.0
  %583 = vmatpush1.msra.mxu0 %v557
  %584 = vmatprep.subr.mxu0 0.0
  %585 = vmatpush1.msra.mxu0 %v558
  %586 = vmatprep.subr.mxu0 0.0
  %587 = vmatpush1.msra.mxu0 %v559
  %588 = vmatprep.subr.mxu0 0.0
  %589 = vmatpush1.msra.mxu0 %v560
  %590 = vmatprep.subr.mxu0 0.0
  %591 = vmatpush1.msra.mxu0 %v561
  %592 = vmatprep.subr.mxu0 0.0
  %593 = vmatpush1.msra.mxu0 %v562
  %594 = vmatprep.subr.mxu0 0.0
  %595 = vmatpush1.msra.mxu0 %v563
  %596 = vmatprep.subr.mxu0 0.0
  %597 = vmatpush1.msra.mxu0 %v564
  %598 = vmatprep.subr.mxu0 0.0
  %599 = vmatpush1.msra.mxu0 %v565
  %600 = vmatprep.subr.mxu0 0.0
  %601 = vmatpush1.msra.mxu0 %v566
  %602 = vmatprep.subr.mxu0 0.0
  %603 = vmatpush1.msra.mxu0 %v567
  %604 = vmatprep.subr.mxu0 0.0
  %605 = vmatpush1.msra.mxu0 %v568
  %606 = vmatprep.subr.mxu0 0.0
  %607 = vmatpush1.msra.mxu0 0.0
  %608 = vmatprep.subr.mxu0 0.0
  %609 = vmatpush1.msra.mxu0 0.0
  %610 = vmatprep.subr.mxu0 0.0
  %611 = vmatpush1.msra.mxu0 0.0
  %612 = vmatprep.subr.mxu0 0.0
  %613 = vmatpush1.msra.mxu0 0.0
  %614 = vmatprep.subr.mxu0 0.0
  %615 = vmatpush1.msra.mxu0 0.0
  %616 = vmatprep.subr.mxu0 0.0
  %617 = vmatpush1.msra.mxu0 0.0
  %618 = vmatprep.subr.mxu0 0.0
  %619 = vmatpush1.msra.mxu0 0.0
  %620 = vmatprep.subr.mxu0 0.0
  %621 = vmatpush1.msra.mxu0 0.0
  %622 = vmatprep.subr.mxu0 0.0
  %623 = vmatpush1.msra.mxu0 0.0
  %624 = vmatprep.subr.mxu0 0.0
  %625 = vmatpush1.msra.mxu0 0.0
  %626 = vmatprep.subr.mxu0 0.0
  %627 = vmatpush1.msra.mxu0 0.0
  %628 = vmatprep.subr.mxu0 0.0
  %629 = vmatpush1.msra.mxu0 0.0
  %630 = vmatprep.subr.mxu0 0.0
  %631 = vmatpush1.msra.mxu0 0.0
  %632 = vmatprep.subr.mxu0 0.0
  %633 = vmatpush1.msra.mxu0 0.0
  %634 = vmatprep.subr.mxu0 0.0
  %635 = vmatpush1.msra.mxu0 0.0
  %636 = vmatprep.subr.mxu0 0.0
  %637 = vmatpush1.msra.mxu0 0.0
  %638 = vmatprep.mubr.f32.mxu0 0.0
  %639 = vmatmul.mubr.f32.gmra.mrb[0].mxu0 %v569
  %v640 = vpop.f32.mrb[0].mxu0
  %v641 = vadd.f32 %v572, %v640
  %v642 = vpop.f32.mrb[0].mxu0
  %643 = vdwg.mxu0
  %644 = vst [vmem:[%s3] sm:$0xff] %v641
  // Predicated region
  $region14: #{actor_critic_forward.1} parent=0 // pred_check
    _
  $region15: #{actor_critic_forward.1} parent=0 // pred_check_branch
    %646 = sbr.rel (0) target = $region17
  $region16: #{actor_critic_forward.1} parent=0 // pred_region
    _
  $region17: #{actor_critic_forward.1} parent=0 // pred_fallthru
    _
  // Predicated region
  $region18: #{actor_critic_forward.1} parent=0 // pred_check
    _
  $region19: #{actor_critic_forward.1} parent=0 // pred_check_branch
    %648 = sbr.rel (0) target = $region21
  $region20: #{actor_critic_forward.1} parent=0 // pred_region
    _
  $region21: #{actor_critic_forward.1} parent=0 // pred_fallthru
    _

</llo_original>
